<compile_context>
chip_gen: v7x
topology: tpu7x:2x2x1
jax: 0.10.0
libtpu: 0.0.40
codegen_flags: <defaults>
</compile_context>

<pallas_src>
import jax
import jax.numpy as jnp
from jax.experimental import pallas as pl
from jax.experimental.pallas import tpu as pltpu
from functools import reduce


def _copy_kernel(x_ref, o_ref):
    # Whole-tile assignment; the kernel is purely DMA / HBM-bound, so the
    # body stays trivial (no per-row slicing, no casts).
    o_ref[...] = x_ref[...]


def _chip_tile_config():
    """Per-generation block sizing for the copy kernel.

    Returns (tile_rows_at_lane_1024, vmem_limit_bytes_or_None). tile_rows is
    expressed for a 1024-wide lane layout and scaled for narrower lanes so the
    block byte size stays constant.
    """
    try:
        kind = jax.devices()[0].device_kind.lower()
    except Exception:
        kind = ""
    if "v5" in kind:
        # v5e: ~820 GB/s HBM, 16 MiB default scoped VMEM -> 2 MiB f32 blocks;
        # 4 double-buffered slabs = 8 MiB, no vmem_limit change needed.
        return 512, None
    if "v6" in kind:
        # v6e: 4 MiB blocks; 4 slabs = 16 MiB fits the 32 MiB default limit.
        return 1024, None
    if "7" in kind:
        # v7x: 3.2 TB/s HBM makes per-step overhead significant; 8 MiB blocks,
        # raise scoped VMEM to 40 MiB (physical VMEM is 64 MiB per TC).
        return 2048, 40 * 1024 * 1024
    # Unknown chip: conservative sizing that is valid everywhere.
    return 512, None


def _pick_lane(n: int):
    """Largest lane-dense width (multiple of 128) that divides n exactly."""
    for lane in (1024, 512, 256, 128):
        if n % lane == 0:
            return lane, False
    return 128, True  # unaligned tail -> a small pad will be needed


def pallas_identity_copy(x: jax.Array) -> jax.Array:
    """Materialized identity copy via a lane-dense, byte-tiled Pallas kernel."""
    orig_shape = x.shape
    n = int(x.size)
    if n == 0:
        return x

    lane, needs_pad = _pick_lane(n)
    flat = x.reshape(-1)
    if needs_pad:
        # Rare path: only the sub-128-element tail forces a pad.
        padded_n = ((n + lane - 1) // lane) * lane
        flat = jnp.pad(flat, (0, padded_n - n))
    else:
        padded_n = n

    rows = padded_n // lane
    base_rows, vmem_limit = _chip_tile_config()
    # Keep block byte size constant regardless of the chosen lane width.
    tile_rows = base_rows * (1024 // lane)
    if rows <= tile_rows:
        # Single block == full array dims (trivially satisfies (8,128) rule).
        tile_rows = rows
    grid = (pl.cdiv(rows, tile_rows),)

    compiler_kwargs = dict(dimension_semantics=("parallel",))
    if vmem_limit is not None:
        compiler_kwargs["vmem_limit_bytes"] = vmem_limit

    x2d = flat.reshape(rows, lane)
    out2d = pl.pallas_call(
        _copy_kernel,
        out_shape=jax.ShapeDtypeStruct((rows, lane), x.dtype),
        grid=grid,
        in_specs=[pl.BlockSpec((tile_rows, lane), lambda r: (r, 0))],
        out_specs=pl.BlockSpec((tile_rows, lane), lambda r: (r, 0)),
        compiler_params=pltpu.CompilerParams(**compiler_kwargs),
    )(x2d)

    if needs_pad:
        return out2d.reshape(-1)[:n].reshape(orig_shape)
    # Aligned case: reshape is a free bitcast; no slice, no extra HBM traffic.
    return out2d.reshape(orig_shape)


class Encoder:
    """JAX/Pallas port of the PyTorch Encoder parent class."""

    def __init__(self, in_channels: int, last_size, hidden_dims):
        self.in_channels = in_channels
        self.last_flat_size = hidden_dims[-1] * reduce(lambda a, b: a * b, last_size)
        self.is_unet = False
        # No learnable parameters are declared in the PyTorch __init__.

    def __call__(self, inpt: jax.Array, materialize_copy: bool = False) -> jax.Array:
        return self.forward(inpt, materialize_copy=materialize_copy)

    def forward(self, inpt: jax.Array, materialize_copy: bool = False) -> jax.Array:
        # Hot path: forward is a pure identity; returning the input is the
        # optimal (zero-HBM-traffic) implementation.
        if not materialize_copy:
            return inpt
        # Optional: callers that need a fresh buffer get the Pallas copy.
        return pallas_identity_copy(inpt)


if __name__ == "__main__":
    key = jax.random.PRNGKey(0)

    # Shapes consistent with the module's conventions:
    # batch=2, in_channels=4, spatial 16x16.
    B, C, H, W = 2, 4, 16, 16
    x = jax.random.normal(key, (B, C, H, W), dtype=jnp.float32)

    enc = Encoder(in_channels=C, last_size=[H, W], hidden_dims=[32])

    # Default hot path: pure identity (no kernel, no HBM traffic).
    y_fast = jax.block_until_ready(enc(x))
    assert y_fast.shape == x.shape and y_fast.dtype == x.dtype
    assert bool(jnp.array_equal(y_fast, x))

    # Materialized-copy path, lane-aligned (no pad / no slice in wrapper).
    y_copy = jax.block_until_ready(enc(x, materialize_copy=True))
    assert y_copy.shape == x.shape and y_copy.dtype == x.dtype
    assert bool(jnp.array_equal(y_copy, x))

    # Materialized-copy path with an unaligned element count (exercises the
    # rare tail-pad branch).
    key2 = jax.random.PRNGKey(1)
    x_odd = jax.random.normal(key2, (2, 3, 5, 7), dtype=jnp.float32)
    y_odd = jax.block_until_ready(enc(x_odd, materialize_copy=True))
    assert y_odd.shape == x_odd.shape and y_odd.dtype == x_odd.dtype
    assert bool(jnp.array_equal(y_odd, x_odd))

    print("KERNEL_OK")
</pallas_src>

<mosaic_0001>
module attributes {stable_mosaic.version = 11 : i64} {
  func.func @_copy_kernel(%arg0: i32, %arg1: memref<2x1024xf32, #tpu.memory_space<vmem>>, %arg2: memref<2x1024xf32, #tpu.memory_space<vmem>>) attributes {dimension_semantics = [#tpu.dimension_semantics<parallel>], iteration_bounds = array<i64: 1>, scalar_prefetch = 0 : i64, scratch_operands = 0 : i64, tpu.core_type = #tpu.core_type<tc>, window_params = [{transform_indices = @transform_0, window_bounds = array<i64: 2, 1024>}, {transform_indices = @transform_1, window_bounds = array<i64: 2, 1024>}]} {
    %c0 = arith.constant 0 : index
    %c0_0 = arith.constant 0 : index
    %0 = vector.load %arg1[%c0, %c0_0] : memref<2x1024xf32, #tpu.memory_space<vmem>>, vector<2x1024xf32>
    %c0_1 = arith.constant 0 : index
    %c0_2 = arith.constant 0 : index
    %1 = vector.load %arg2[%c0_1, %c0_2] : memref<2x1024xf32, #tpu.memory_space<vmem>>, vector<2x1024xf32>
    tpu.vector_store %arg2[%c0_1, %c0_2], %0 {strides = array<i32>} : memref<2x1024xf32, #tpu.memory_space<vmem>>, vector<2x1024xf32>,
    return
  }
  func.func @transform_0(%arg0: i32) -> (i32, i32) {
    %c0_i32 = arith.constant 0 : i32
    %c0_i32_0 = arith.constant 0 : i32
    return %arg0, %c0_i32 : i32, i32
  }
  func.func @transform_1(%arg0: i32) -> (i32, i32) {
    %c0_i32 = arith.constant 0 : i32
    %c0_i32_0 = arith.constant 0 : i32
    return %arg0, %c0_i32 : i32, i32
  }
}

</mosaic_0001>

<llo_original>
// kernel: tpu_custom_call.1
$region0: #{tpu_custom_call.1}
  #allocation0 [shape = 'u32[]', space=smem, size = 0x4, offset = 0x4, fixed_abs, tag = 'smem constant byte address 0x4 - core index']
  #allocation1 [shape = 'u32[144,128]{1,0:T(1,128)}', space=vmem, size = 0x12000, scoped, tag = 'internal scratch']
  %s0 = inlined_call_operand.hbm [shape: f32[2,1024], index: 0, kind: input, shape index: {}]
  %s1 = inlined_call_operand.hbm [shape: f32[2,1024], index: 1, kind: output, shape index: {}]
  %s2 = sld [smem:[#allocation0]]
  $region18: #{tpu_custom_call.1} parent=0
    _
  %s4 = ssub.s32 1, %s2
  %s5 = scalar_select 0, %s4, %s2
  $region1: #{tpu_custom_call.1} parent=0
    #allocation2 [shape = 'u8[8192]{0}', space=vmem, size = 0x2000, scoped, tag = 'input window, operand 0, single buffered']
    #allocation3 [shape = 's32[1]{0}', space=sflag, size = 0x4, scoped, tag = 'scoped memory for tpu_custom_call.1']
    #allocation4 [shape = 's32[1]{0}', space=sflag, size = 0x4, scoped, tag = 'scoped memory for tpu_custom_call.1']
    #allocation5 [shape = 'u8[8192]{0}', space=vmem, size = 0x2000, scoped, tag = 'output window, operand 0, single buffered']
    %6 = vsyncpa [#allocation3], 0
    %7 = vsyncpa [#allocation4], 0
    // Predicated region
    $region2: #{tpu_custom_call.1} parent=1 // pred_check
      _
    $region3: #{tpu_custom_call.1} parent=1 // pred_check_branch
      %9 = sbr.rel (0) target = $region5
    $region4: #{tpu_custom_call.1} parent=1 // pred_region
      %s11 = ssub.s32 256, 256
      %12 = vsyncadd [#allocation3], %s11
      %s14 = sshll.u32 [#allocation2], 4
      %s15 = int_to_ptr.vmem [resolvable:$true] %s14
      %17 = dma.hbm_to_vmem [thread:$0]  %s0, 256, %s15, [#allocation3]
    $region5: #{tpu_custom_call.1} parent=1 // pred_fallthru
      _
    // Predicated region
    $region6: #{tpu_custom_call.1} parent=1 // pred_check
      _
    $region7: #{tpu_custom_call.1} parent=1 // pred_check_branch
      %19 = sbr.rel (0) target = $region9
    $region8: #{tpu_custom_call.1} parent=1 // pred_region
      %20 = dma.done [#allocation3], 256
    $region9: #{tpu_custom_call.1} parent=1 // pred_fallthru
      _
    %v21 = vld [vmem:[#allocation2] sm:$0xff]
    %v22 = vld [vmem:[#allocation2 + $0x8] sm:$0xff]
    %23 = vst [vmem:[#allocation5] sm:$0xff] %v21
    %24 = vst [vmem:[#allocation5 + $0x8] sm:$0xff] %v22
    // Predicated region
    $region10: #{tpu_custom_call.1} parent=1 // pred_check
      _
    $region11: #{tpu_custom_call.1} parent=1 // pred_check_branch
      %26 = sbr.rel (0) target = $region13
    $region12: #{tpu_custom_call.1} parent=1 // pred_region
      %s28 = ssub.s32 256, 256
      %29 = vsyncadd [#allocation4], %s28
      %s31 = sshll.u32 [#allocation5], 4
      %s32 = int_to_ptr.vmem [resolvable:$true] %s31
      %34 = dma.vmem_to_hbm [thread:$0]  %s32, 256, %s1, [#allocation4]
    $region13: #{tpu_custom_call.1} parent=1 // pred_fallthru
      _
    // Predicated region
    $region14: #{tpu_custom_call.1} parent=1 // pred_check
      _
    $region15: #{tpu_custom_call.1} parent=1 // pred_check_branch
      %36 = sbr.rel (0) target = $region17
    $region16: #{tpu_custom_call.1} parent=1 // pred_region
      %37 = dma.done [#allocation4], 256
    $region17: #{tpu_custom_call.1} parent=1 // pred_fallthru
      _
    %38 = vsyncpa [#allocation3], 1
    %39 = vsyncpa [#allocation4], 1

</llo_original>
